<compile_context>
chip_gen: v7x
topology: tpu7x:2x2x1
jax: 0.10.0
libtpu: 0.0.40
codegen_flags: <defaults>
</compile_context>

<pallas_src>
import jax
import jax.numpy as jnp
from jax.experimental import pallas as pl
from jax.experimental.pallas import tpu as pltpu


def _asp_kernel(x_ref, mask_ref, w1_ref, b1_ref, w2_ref, b2_ref,
                o_ref, m_sc, l_sc, s1_sc, s2_sc):
    TB, TT, D = x_ref.shape
    t = pl.program_id(1)
    n_t = pl.num_programs(1)

    @pl.when(t == 0)
    def _init():
        m_sc[...] = jnp.full(m_sc.shape, -1e30, dtype=jnp.float32)
        l_sc[...] = jnp.zeros(l_sc.shape, dtype=jnp.float32)
        s1_sc[...] = jnp.zeros(s1_sc.shape, dtype=jnp.float32)
        s2_sc[...] = jnp.zeros(s2_sc.shape, dtype=jnp.float32)

    x = x_ref[...].astype(jnp.float32)                       # (TB, TT, D)

    # --- attention MLP: Linear(D->A) -> tanh -> Linear(A->1) ---
    h = jnp.dot(x.reshape(TB * TT, D), w1_ref[...],
                preferred_element_type=jnp.float32) + b1_ref[...]
    h = jnp.tanh(h)                                          # (TB*TT, A)
    A = h.shape[-1]
    h = h.reshape(TB, TT, A)
    logits = jnp.sum(h * w2_ref[...].reshape(1, 1, A), axis=-1)   # (TB, TT)
    logits = logits + b2_ref[...]                            # (1,1) broadcast

    # --- masking (user attention_mask and/or time padding), torch semantics ---
    mask = mask_ref[...][:, :, 0]                            # (TB, TT)
    logits = jnp.where(mask > 0, logits, jnp.float32(-1e9))

    # --- online softmax + streaming weighted moments ---
    tile_max = jnp.max(logits, axis=1, keepdims=True)        # (TB, 1)
    m_new = jnp.maximum(m_sc[...], tile_max)
    alpha = jnp.exp(m_sc[...] - m_new)                       # (TB, 1)
    p = jnp.exp(logits - m_new)                              # (TB, TT)

    p3 = p.reshape(TB, 1, TT)
    s1_tile = jnp.einsum('bqt,btd->bqd', p3, x,
                         preferred_element_type=jnp.float32)[:, 0, :]
    s2_tile = jnp.einsum('bqt,btd->bqd', p3, x * x,
                         preferred_element_type=jnp.float32)[:, 0, :]

    l_sc[...] = alpha * l_sc[...] + jnp.sum(p, axis=1, keepdims=True)
    s1_sc[...] = alpha * s1_sc[...] + s1_tile
    s2_sc[...] = alpha * s2_sc[...] + s2_tile
    m_sc[...] = m_new

    @pl.when(t == n_t - 1)
    def _finalize():
        inv_l = 1.0 / l_sc[...]                              # (TB, 1)
        mean = s1_sc[...] * inv_l                            # (TB, D)
        var = s2_sc[...] * inv_l - mean * mean
        std = jnp.sqrt(jnp.maximum(var, 1e-9))
        o_ref[:, :D] = mean.astype(o_ref.dtype)
        o_ref[:, D:] = std.astype(o_ref.dtype)


def attentive_statistics_pooling(x, params, attention_mask=None, *, tile_t=128):
    """x: (B, T, D).  params = (w1 (D,A), b1 (A,), w2 (A,), b2 ()).
    Returns (B, 2*D) = concat(weighted_mean, weighted_std)."""
    B, T, D = x.shape
    w1, b1, w2, b2 = params
    A = w1.shape[1]

    # ---- time tiling (sublane-aligned) ----
    if T <= tile_t:
        TT = T
        T_pad = T
    else:
        TT = max(8, (tile_t // 8) * 8)
        T_pad = pl.cdiv(T, TT) * TT

    # ---- batch tiling: full batch, or 8-row tiles when cleanly divisible ----
    TB = 8 if (B > 8 and B % 8 == 0) else B

    # ---- validity mask: user attention_mask AND padding rows ----
    if attention_mask is None:
        valid = jnp.ones((B, T), jnp.float32)
    else:
        valid = attention_mask.astype(jnp.float32)
    if T_pad != T:
        x = jnp.pad(x, ((0, 0), (0, T_pad - T), (0, 0)))
        valid = jnp.pad(valid, ((0, 0), (0, T_pad - T)))
    mask3 = valid[:, :, None]                                # (B, T_pad, 1)

    grid = (B // TB, T_pad // TT)

    return pl.pallas_call(
        _asp_kernel,
        out_shape=jax.ShapeDtypeStruct((B, 2 * D), x.dtype),
        grid_spec=pltpu.PrefetchScalarGridSpec(
            num_scalar_prefetch=0,
            grid=grid,
            in_specs=[
                pl.BlockSpec((TB, TT, D), lambda b, t: (b, t, 0)),   # x tile
                pl.BlockSpec((TB, TT, 1), lambda b, t: (b, t, 0)),   # mask tile
                pl.BlockSpec((D, A), lambda b, t: (0, 0)),           # w1 (resident)
                pl.BlockSpec((1, A), lambda b, t: (0, 0)),           # b1
                pl.BlockSpec((1, A), lambda b, t: (0, 0)),           # w2
                pl.BlockSpec((1, 1), lambda b, t: (0, 0)),           # b2
            ],
            out_specs=pl.BlockSpec((TB, 2 * D), lambda b, t: (b, 0)),
            scratch_shapes=[
                pltpu.VMEM((TB, 1), jnp.float32),   # running max
                pltpu.VMEM((TB, 1), jnp.float32),   # running denom
                pltpu.VMEM((TB, D), jnp.float32),   # running weighted sum(x)
                pltpu.VMEM((TB, D), jnp.float32),   # running weighted sum(x^2)
            ],
        ),
        compiler_params=pltpu.CompilerParams(
            dimension_semantics=("parallel", "arbitrary")),
    )(x, mask3, w1, b1.reshape(1, A), w2.reshape(1, A), b2.reshape(1, 1))


def _reference(x, params, attention_mask=None):
    """Pure-JAX reference matching the PyTorch forward."""
    w1, b1, w2, b2 = params
    logits = jnp.tanh(x @ w1 + b1) @ w2 + b2                 # (B, T)
    if attention_mask is not None:
        logits = jnp.where(attention_mask == 0, -1e9, logits)
    w = jax.nn.softmax(logits, axis=1)[:, :, None]           # (B, T, 1)
    mean = jnp.sum(x * w, axis=1)
    var = jnp.sum(x * x * w, axis=1) - mean * mean
    std = jnp.sqrt(jnp.clip(var, 1e-9, None))
    return jnp.concatenate([mean, std], axis=1)


if __name__ == "__main__":
    B, T, D, A = 2, 16, 32, 8
    key = jax.random.PRNGKey(0)
    k1, k2, k3, k4, k5, km = jax.random.split(key, 6)
    x = jax.random.normal(k1, (B, T, D), jnp.float32)
    w1 = jax.random.normal(k2, (D, A), jnp.float32) * 0.3
    b1 = jax.random.normal(k3, (A,), jnp.float32) * 0.1
    w2 = jax.random.normal(k4, (A,), jnp.float32) * 0.3
    b2 = jax.random.normal(k5, (), jnp.float32) * 0.1
    params = (w1, b1, w2, b2)

    # no-mask path (tile_t=8 -> 2 time tiles, exercises the streaming reduction)
    out = jax.block_until_ready(
        attentive_statistics_pooling(x, params, tile_t=8))
    ref = _reference(x, params)
    assert out.shape == (B, 2 * D)
    assert jnp.allclose(out, ref, atol=1e-4, rtol=1e-4), "mismatch (no mask)"

    # masked path (matches torch masked_fill(-1e9) semantics)
    mask = (jax.random.uniform(km, (B, T)) > 0.3).astype(jnp.float32)
    mask = mask.at[:, 0].set(1.0)
    out_m = jax.block_until_ready(
        attentive_statistics_pooling(x, params, attention_mask=mask, tile_t=8))
    ref_m = _reference(x, params, attention_mask=mask)
    assert jnp.allclose(out_m, ref_m, atol=1e-4, rtol=1e-4), "mismatch (masked)"

    print("KERNEL_OK")
</pallas_src>

<mosaic_0001>
module attributes {stable_mosaic.version = 11 : i64} {
  func.func @_asp_kernel(%arg0: i32, %arg1: i32, %arg2: memref<2x8x32xf32, #tpu.memory_space<vmem>>, %arg3: memref<2x8x1xf32, #tpu.memory_space<vmem>>, %arg4: memref<32x8xf32, #tpu.memory_space<vmem>>, %arg5: memref<1x8xf32, #tpu.memory_space<vmem>>, %arg6: memref<1x8xf32, #tpu.memory_space<vmem>>, %arg7: memref<1x1xf32, #tpu.memory_space<vmem>>, %arg8: memref<2x64xf32, #tpu.memory_space<vmem>>, %arg9: memref<2x1xf32, #tpu.memory_space<vmem>>, %arg10: memref<2x1xf32, #tpu.memory_space<vmem>>, %arg11: memref<2x32xf32, #tpu.memory_space<vmem>>, %arg12: memref<2x32xf32, #tpu.memory_space<vmem>>) attributes {dimension_semantics = [#tpu.dimension_semantics<parallel>, #tpu.dimension_semantics<arbitrary>], iteration_bounds = array<i64: 1, 2>, scalar_prefetch = 0 : i64, scratch_operands = 4 : i64, tpu.core_type = #tpu.core_type<tc>, window_params = [{transform_indices = @transform_0, window_bounds = array<i64: 2, 8, 32>}, {transform_indices = @transform_1, window_bounds = array<i64: 2, 8, 1>}, {pipeline_mode = #tpu.pipeline_mode<synchronous>, transform_indices = @transform_2, window_bounds = array<i64: 32, 8>}, {pipeline_mode = #tpu.pipeline_mode<synchronous>, transform_indices = @transform_3, window_bounds = array<i64: 1, 8>}, {pipeline_mode = #tpu.pipeline_mode<synchronous>, transform_indices = @transform_4, window_bounds = array<i64: 1, 8>}, {pipeline_mode = #tpu.pipeline_mode<synchronous>, transform_indices = @transform_5, window_bounds = array<i64: 1, 1>}, {transform_indices = @transform_6, window_bounds = array<i64: 2, 64>}]} {
    %c0_i32 = arith.constant 0 : i32
    %0 = arith.cmpi eq, %arg1, %c0_i32 : i32
    %1 = arith.extui %0 : i1 to i32
    %c0_i32_0 = arith.constant 0 : i32
    %2 = arith.cmpi ne, %1, %c0_i32_0 : i32
    scf.if %2 {
      %cst_40 = arith.constant -1.000000e+30 : f32
      %62 = vector.broadcast %cst_40 : f32 to vector<2x1xf32>
      %c0_41 = arith.constant 0 : index
      %c0_42 = arith.constant 0 : index
      %63 = vector.load %arg9[%c0_41, %c0_42] : memref<2x1xf32, #tpu.memory_space<vmem>>, vector<2x1xf32>
      tpu.vector_store %arg9[%c0_41, %c0_42], %62 {strides = array<i32>} : memref<2x1xf32, #tpu.memory_space<vmem>>, vector<2x1xf32>,
      %cst_43 = arith.constant 0.000000e+00 : f32
      %64 = vector.broadcast %cst_43 : f32 to vector<2x1xf32>
      %c0_44 = arith.constant 0 : index
      %c0_45 = arith.constant 0 : index
      %65 = vector.load %arg10[%c0_44, %c0_45] : memref<2x1xf32, #tpu.memory_space<vmem>>, vector<2x1xf32>
      tpu.vector_store %arg10[%c0_44, %c0_45], %64 {strides = array<i32>} : memref<2x1xf32, #tpu.memory_space<vmem>>, vector<2x1xf32>,
      %cst_46 = arith.constant 0.000000e+00 : f32
      %66 = vector.broadcast %cst_46 : f32 to vector<2x32xf32>
      %c0_47 = arith.constant 0 : index
      %c0_48 = arith.constant 0 : index
      %67 = vector.load %arg11[%c0_47, %c0_48] : memref<2x32xf32, #tpu.memory_space<vmem>>, vector<2x32xf32>
      tpu.vector_store %arg11[%c0_47, %c0_48], %66 {strides = array<i32>} : memref<2x32xf32, #tpu.memory_space<vmem>>, vector<2x32xf32>,
      %cst_49 = arith.constant 0.000000e+00 : f32
      %68 = vector.broadcast %cst_49 : f32 to vector<2x32xf32>
      %c0_50 = arith.constant 0 : index
      %c0_51 = arith.constant 0 : index
      %69 = vector.load %arg12[%c0_50, %c0_51] : memref<2x32xf32, #tpu.memory_space<vmem>>, vector<2x32xf32>
      tpu.vector_store %arg12[%c0_50, %c0_51], %68 {strides = array<i32>} : memref<2x32xf32, #tpu.memory_space<vmem>>, vector<2x32xf32>,
    } else {
    }
    %c0 = arith.constant 0 : index
    %c0_1 = arith.constant 0 : index
    %c0_2 = arith.constant 0 : index
    %3 = vector.load %arg2[%c0, %c0_1, %c0_2] : memref<2x8x32xf32, #tpu.memory_space<vmem>>, vector<2x8x32xf32>
    %4 = vector.shape_cast %3 : vector<2x8x32xf32> to vector<16x32xf32>
    %c0_3 = arith.constant 0 : index
    %c0_4 = arith.constant 0 : index
    %5 = vector.load %arg4[%c0_3, %c0_4] : memref<32x8xf32, #tpu.memory_space<vmem>>, vector<32x8xf32>
    %cst = arith.constant dense<0.000000e+00> : vector<16x8xf32>
    %6 = tpu.matmul %4, %5, %cst {dimension_numbers = #tpu.dot_dimension_numbers<[1], [0], [0], [1], [0, 0, 1, 1], [], []>} : vector<16x32xf32>, vector<32x8xf32>, vector<16x8xf32> -> vector<16x8xf32>
    %c0_5 = arith.constant 0 : index
    %c0_6 = arith.constant 0 : index
    %7 = vector.load %arg5[%c0_5, %c0_6] : memref<1x8xf32, #tpu.memory_space<vmem>>, vector<1x8xf32>
    %8 = vector.broadcast %7 : vector<1x8xf32> to vector<16x8xf32>
    %9 = arith.addf %6, %8 : vector<16x8xf32>
    %10 = math.tanh %9 : vector<16x8xf32>
    %11 = vector.shape_cast %10 : vector<16x8xf32> to vector<2x8x8xf32>
    %c0_7 = arith.constant 0 : index
    %c0_8 = arith.constant 0 : index
    %12 = vector.load %arg6[%c0_7, %c0_8] : memref<1x8xf32, #tpu.memory_space<vmem>>, vector<1x8xf32>
    %13 = vector.shape_cast %12 : vector<1x8xf32> to vector<1x1x8xf32>
    %14 = vector.broadcast %13 : vector<1x1x8xf32> to vector<2x8x8xf32>
    %15 = arith.mulf %11, %14 : vector<2x8x8xf32>
    %cst_9 = arith.constant dense<0.000000e+00> : vector<2x8xf32>
    %16 = vector.multi_reduction <add>, %15, %cst_9 [2] : vector<2x8x8xf32> to vector<2x8xf32>
    %c0_10 = arith.constant 0 : index
    %c0_11 = arith.constant 0 : index
    %17 = vector.load %arg7[%c0_10, %c0_11] : memref<1x1xf32, #tpu.memory_space<vmem>>, vector<1x1xf32>
    %18 = vector.broadcast %17 : vector<1x1xf32> to vector<2x8xf32>
    %19 = arith.addf %16, %18 : vector<2x8xf32>
    %c0_12 = arith.constant 0 : index
    %c0_13 = arith.constant 0 : index
    %c0_14 = arith.constant 0 : index
    %20 = vector.load %arg3[%c0_12, %c0_13, %c0_14] : memref<2x8x1xf32, #tpu.memory_space<vmem>>, vector<2x8x1xf32>
    %21 = vector.shape_cast %20 : vector<2x8x1xf32> to vector<2x8xf32>
    %cst_15 = arith.constant 0.000000e+00 : f32
    %22 = vector.broadcast %cst_15 : f32 to vector<2x8xf32>
    %23 = arith.cmpf ogt, %21, %22 : vector<2x8xf32>
    %cst_16 = arith.constant -1.000000e+09 : f32
    %24 = vector.broadcast %cst_16 : f32 to vector<2x8xf32>
    %25 = arith.select %23, %19, %24 : vector<2x8xi1>, vector<2x8xf32>
    %cst_17 = arith.constant dense<0xFF800000> : vector<2xf32>
    %26 = vector.multi_reduction <maximumf>, %25, %cst_17 [1] : vector<2x8xf32> to vector<2xf32>
    %27 = vector.shape_cast %26 : vector<2xf32> to vector<2x1xf32>
    %c0_18 = arith.constant 0 : index
    %c0_19 = arith.constant 0 : index
    %28 = vector.load %arg9[%c0_18, %c0_19] : memref<2x1xf32, #tpu.memory_space<vmem>>, vector<2x1xf32>
    %29 = arith.maximumf %28, %27 : vector<2x1xf32>
    %c0_20 = arith.constant 0 : index
    %c0_21 = arith.constant 0 : index
    %30 = vector.load %arg9[%c0_20, %c0_21] : memref<2x1xf32, #tpu.memory_space<vmem>>, vector<2x1xf32>
    %31 = arith.subf %30, %29 : vector<2x1xf32>
    %32 = math.exp %31 : vector<2x1xf32>
    %33 = vector.broadcast %29 : vector<2x1xf32> to vector<2x8xf32>
    %34 = arith.subf %25, %33 : vector<2x8xf32>
    %35 = math.exp %34 : vector<2x8xf32>
    %36 = vector.shape_cast %35 : vector<2x8xf32> to vector<2x1x8xf32>
    "tpu.trace_start"() <{level = 10 : i32, message = "bqt,btd->bqd"}> : () -> ()
    %cst_22 = arith.constant dense<0.000000e+00> : vector<2x1x32xf32>
    %37 = tpu.matmul %36, %3, %cst_22 {dimension_numbers = #tpu.dot_dimension_numbers<[2], [1], [1], [2], [0, 0, 0, 1, 1, 2], [0], [0]>} : vector<2x1x8xf32>, vector<2x8x32xf32>, vector<2x1x32xf32> -> vector<2x1x32xf32>
    "tpu.trace_stop"() : () -> ()
    %38 = vector.shape_cast %37 : vector<2x1x32xf32> to vector<2x32xf32>
    %39 = arith.mulf %3, %3 : vector<2x8x32xf32>
    "tpu.trace_start"() <{level = 10 : i32, message = "bqt,btd->bqd"}> : () -> ()
    %cst_23 = arith.constant dense<0.000000e+00> : vector<2x1x32xf32>
    %40 = tpu.matmul %36, %39, %cst_23 {dimension_numbers = #tpu.dot_dimension_numbers<[2], [1], [1], [2], [0, 0, 0, 1, 1, 2], [0], [0]>} : vector<2x1x8xf32>, vector<2x8x32xf32>, vector<2x1x32xf32> -> vector<2x1x32xf32>
    "tpu.trace_stop"() : () -> ()
    %41 = vector.shape_cast %40 : vector<2x1x32xf32> to vector<2x32xf32>
    %c0_24 = arith.constant 0 : index
    %c0_25 = arith.constant 0 : index
    %42 = vector.load %arg10[%c0_24, %c0_25] : memref<2x1xf32, #tpu.memory_space<vmem>>, vector<2x1xf32>
    %43 = arith.mulf %32, %42 : vector<2x1xf32>
    %cst_26 = arith.constant dense<0.000000e+00> : vector<2xf32>
    %44 = vector.multi_reduction <add>, %35, %cst_26 [1] : vector<2x8xf32> to vector<2xf32>
    %45 = vector.shape_cast %44 : vector<2xf32> to vector<2x1xf32>
    %46 = arith.addf %43, %45 : vector<2x1xf32>
    %c0_27 = arith.constant 0 : index
    %c0_28 = arith.constant 0 : index
    %47 = vector.load %arg10[%c0_27, %c0_28] : memref<2x1xf32, #tpu.memory_space<vmem>>, vector<2x1xf32>
    tpu.vector_store %arg10[%c0_27, %c0_28], %46 {strides = array<i32>} : memref<2x1xf32, #tpu.memory_space<vmem>>, vector<2x1xf32>,
    %c0_29 = arith.constant 0 : index
    %c0_30 = arith.constant 0 : index
    %48 = vector.load %arg11[%c0_29, %c0_30] : memref<2x32xf32, #tpu.memory_space<vmem>>, vector<2x32xf32>
    %49 = vector.broadcast %32 : vector<2x1xf32> to vector<2x32xf32>
    %50 = arith.mulf %49, %48 : vector<2x32xf32>
    %51 = arith.addf %50, %38 : vector<2x32xf32>
    %c0_31 = arith.constant 0 : index
    %c0_32 = arith.constant 0 : index
    %52 = vector.load %arg11[%c0_31, %c0_32] : memref<2x32xf32, #tpu.memory_space<vmem>>, vector<2x32xf32>
    tpu.vector_store %arg11[%c0_31, %c0_32], %51 {strides = array<i32>} : memref<2x32xf32, #tpu.memory_space<vmem>>, vector<2x32xf32>,
    %c0_33 = arith.constant 0 : index
    %c0_34 = arith.constant 0 : index
    %53 = vector.load %arg12[%c0_33, %c0_34] : memref<2x32xf32, #tpu.memory_space<vmem>>, vector<2x32xf32>
    %54 = vector.broadcast %32 : vector<2x1xf32> to vector<2x32xf32>
    %55 = arith.mulf %54, %53 : vector<2x32xf32>
    %56 = arith.addf %55, %41 : vector<2x32xf32>
    %c0_35 = arith.constant 0 : index
    %c0_36 = arith.constant 0 : index
    %57 = vector.load %arg12[%c0_35, %c0_36] : memref<2x32xf32, #tpu.memory_space<vmem>>, vector<2x32xf32>
    tpu.vector_store %arg12[%c0_35, %c0_36], %56 {strides = array<i32>} : memref<2x32xf32, #tpu.memory_space<vmem>>, vector<2x32xf32>,
    %c0_37 = arith.constant 0 : index
    %c0_38 = arith.constant 0 : index
    %58 = vector.load %arg9[%c0_37, %c0_38] : memref<2x1xf32, #tpu.memory_space<vmem>>, vector<2x1xf32>
    tpu.vector_store %arg9[%c0_37, %c0_38], %29 {strides = array<i32>} : memref<2x1xf32, #tpu.memory_space<vmem>>, vector<2x1xf32>,
    %c1_i32 = arith.constant 1 : i32
    %59 = arith.cmpi eq, %arg1, %c1_i32 : i32
    %60 = arith.extui %59 : i1 to i32
    %c0_i32_39 = arith.constant 0 : i32
    %61 = arith.cmpi ne, %60, %c0_i32_39 : i32
    scf.if %61 {
      %c0_40 = arith.constant 0 : index
      %c0_41 = arith.constant 0 : index
      %62 = vector.load %arg10[%c0_40, %c0_41] : memref<2x1xf32, #tpu.memory_space<vmem>>, vector<2x1xf32>
      %cst_42 = arith.constant 1.000000e+00 : f32
      %63 = vector.broadcast %cst_42 : f32 to vector<2x1xf32>
      %64 = arith.divf %63, %62 : vector<2x1xf32>
      %c0_43 = arith.constant 0 : index
      %c0_44 = arith.constant 0 : index
      %65 = vector.load %arg11[%c0_43, %c0_44] : memref<2x32xf32, #tpu.memory_space<vmem>>, vector<2x32xf32>
      %66 = vector.broadcast %64 : vector<2x1xf32> to vector<2x32xf32>
      %67 = arith.mulf %65, %66 : vector<2x32xf32>
      %c0_45 = arith.constant 0 : index
      %c0_46 = arith.constant 0 : index
      %68 = vector.load %arg12[%c0_45, %c0_46] : memref<2x32xf32, #tpu.memory_space<vmem>>, vector<2x32xf32>
      %69 = vector.broadcast %64 : vector<2x1xf32> to vector<2x32xf32>
      %70 = arith.mulf %68, %69 : vector<2x32xf32>
      %71 = arith.mulf %67, %67 : vector<2x32xf32>
      %72 = arith.subf %70, %71 : vector<2x32xf32>
      %cst_47 = arith.constant 9.99999971E-10 : f32
      %73 = vector.broadcast %cst_47 : f32 to vector<2x32xf32>
      %74 = arith.maximumf %72, %73 : vector<2x32xf32>
      %75 = math.sqrt %74 : vector<2x32xf32>
      %c0_48 = arith.constant 0 : index
      %c0_49 = arith.constant 0 : index
      %76 = vector.load %arg8[%c0_48, %c0_49] : memref<2x64xf32, #tpu.memory_space<vmem>>, vector<2x32xf32>
      tpu.vector_store %arg8[%c0_48, %c0_49], %67 {strides = array<i32>} : memref<2x64xf32, #tpu.memory_space<vmem>>, vector<2x32xf32>,
      %c0_50 = arith.constant 0 : index
      %c32 = arith.constant 32 : index
      %77 = vector.load %arg8[%c0_50, %c32] : memref<2x64xf32, #tpu.memory_space<vmem>>, vector<2x32xf32>
      tpu.vector_store %arg8[%c0_50, %c32], %75 {strides = array<i32>} : memref<2x64xf32, #tpu.memory_space<vmem>>, vector<2x32xf32>,
    } else {
    }
    return
  }
  func.func @transform_0(%arg0: i32, %arg1: i32) -> (i32, i32, i32) {
    %c0_i32 = arith.constant 0 : i32
    %c0_i32_0 = arith.constant 0 : i32
    return %arg0, %arg1, %c0_i32 : i32, i32, i32
  }
  func.func @transform_1(%arg0: i32, %arg1: i32) -> (i32, i32, i32) {
    %c0_i32 = arith.constant 0 : i32
    %c0_i32_0 = arith.constant 0 : i32
    return %arg0, %arg1, %c0_i32 : i32, i32, i32
  }
  func.func @transform_2(%arg0: i32, %arg1: i32) -> (i32, i32) {
    %c0_i32 = arith.constant 0 : i32
    %c0_i32_0 = arith.constant 0 : i32
    %c0_i32_1 = arith.constant 0 : i32
    return %c0_i32, %c0_i32_0 : i32, i32
  }
  func.func @transform_3(%arg0: i32, %arg1: i32) -> (i32, i32) {
    %c0_i32 = arith.constant 0 : i32
    %c0_i32_0 = arith.constant 0 : i32
    %c0_i32_1 = arith.constant 0 : i32
    return %c0_i32, %c0_i32_0 : i32, i32
  }
  func.func @transform_4(%arg0: i32, %arg1: i32) -> (i32, i32) {
    %c0_i32 = arith.constant 0 : i32
    %c0_i32_0 = arith.constant 0 : i32
    %c0_i32_1 = arith.constant 0 : i32
    return %c0_i32, %c0_i32_0 : i32, i32
  }
  func.func @transform_5(%arg0: i32, %arg1: i32) -> (i32, i32) {
    %c0_i32 = arith.constant 0 : i32
    %c0_i32_0 = arith.constant 0 : i32
    %c0_i32_1 = arith.constant 0 : i32
    return %c0_i32, %c0_i32_0 : i32, i32
  }
  func.func @transform_6(%arg0: i32, %arg1: i32) -> (i32, i32) {
    %c0_i32 = arith.constant 0 : i32
    %c0_i32_0 = arith.constant 0 : i32
    return %arg0, %c0_i32 : i32, i32
  }
}

</mosaic_0001>

<llo_original>
// kernel: tpu_custom_call.1
$region0: #{tpu_custom_call.1}
  #allocation0 [shape = 'u32[]', space=smem, size = 0x4, offset = 0x4, fixed_abs, tag = 'smem constant byte address 0x4 - core index']
  #allocation1 [shape = 'u32[144,128]{1,0:T(1,128)}', space=vmem, size = 0x12000, scoped, tag = 'internal scratch']
  #allocation2 [shape = 'f32[2,1]{1,0:T(2,128)}', space=vmem, size = 0x400, scoped, tag = 'scratch operand']
  #allocation3 [shape = 'f32[2,1]{1,0:T(2,128)}', space=vmem, size = 0x400, scoped, tag = 'scratch operand']
  #allocation4 [shape = 'f32[2,32]{1,0:T(2,128)}', space=vmem, size = 0x400, scoped, tag = 'scratch operand']
  #allocation5 [shape = 'f32[2,32]{1,0:T(2,128)}', space=vmem, size = 0x400, scoped, tag = 'scratch operand']
  #allocation6 [shape = 'f32[1,1]{1,0:T(1,128)S(1)}', space=vmem, size = 0x200, scoped, tag = 'scoped memory for tpu_custom_call.1']
  %s0 = inlined_call_operand.vmem [shape: f32[2,16,32], index: 0, kind: input, shape index: {}]
  %s1 = inlined_call_operand.vmem [shape: f32[2,16,1], index: 1, kind: input, shape index: {}]
  %s2 = inlined_call_operand.vmem [shape: f32[32,8], index: 2, kind: input, shape index: {}]
  %s3 = inlined_call_operand.vmem [shape: f32[1,8], index: 3, kind: input, shape index: {}]
  %s4 = inlined_call_operand.vmem [shape: f32[1,8], index: 4, kind: input, shape index: {}]
  %s5 = inlined_call_operand.<no memory space> [shape: f32[1,1], index: 5, kind: input, shape index: {}]
  %s6 = inlined_call_operand.hbm [shape: f32[2,64], index: 6, kind: output, shape index: {}]
  %s7 = sld [smem:[#allocation0]]
  $region141: #{tpu_custom_call.1} parent=0
    _
  %s9 = ssub.s32 1, %s7
  %s10 = scalar_select 0, %s9, %s7
  %v11 = vstv %s5
  %12 = vst [vmem:[#allocation6] sm:$0x1] %v11
  $region1: #{tpu_custom_call.1} parent=0
    #allocation7 [shape = 'u8[16384]{0}', space=vmem, size = 0x4000, scoped, tag = 'input window, operand 0']
    #allocation8 [shape = 'u8[16384]{0}', space=vmem, size = 0x4000, scoped, tag = 'input window, operand 1']
    #allocation9 [shape = 'u8[1024]{0}', space=vmem, size = 0x400, scoped, tag = 'output window, operand 0, single buffered']
    #allocation10 [shape = 's32[2]{0}', space=sflag, size = 0x8, scoped, tag = 'scoped memory for tpu_custom_call.1']
    %13 = vsyncpa [#allocation10], 0
    loop: start=0, step=1, limit=4
    $region2: #{tpu_custom_call.1} parent=1 // loop_pre_header
      _
    $region3: #{tpu_custom_call.1} parent=1 // loop_header
      %s15 = sphi 0, %s19
      %p16 = scmp.ge.s32.totalorder %s15, 4
      %s22 = sphi 0, %s34
      %s23 = sphi 0, %s30
      %s24 = sphi 0, %s22
      %s25 = sphi 0, %s23
      %s26 = sphi 0, %s24
      %s27 = sphi 0, %s25
      %s39 = sphi 0, %s41
      %s42 = sphi 0, %s39
      %s43 = sphi 0, %s42
      %s59 = sphi 0, %s43
      %s67 = sphi 0, %s69
      %s70 = sphi 0, %s67
      %s71 = sphi 0, %s70
      %s87 = sphi 0, %s71
      %s91 = sphi 0, %s91
      %s93 = sphi 0, %s91
      %s94 = sphi 0, %s93
      %s108 = sphi 0, %s94
      %s112 = sphi 0, %s112
      %s114 = sphi 0, %s112
      %s115 = sphi 0, %s114
      %s129 = sphi 0, %s115
      %s133 = sphi 0, %s133
      %s135 = sphi 0, %s133
      %s136 = sphi 0, %s135
      %s150 = sphi 0, %s136
      %s154 = sphi 0, %s154
      %s156 = sphi 0, %s154
      %s157 = sphi 0, %s156
      %s171 = sphi 0, %s157
      %s177 = sphi 0, %s179
      %s180 = sphi 0, %s177
      %s181 = sphi 0, %s180
      %s197 = sphi 0, %s181
    $region4: #{tpu_custom_call.1} parent=1 // loop_header_branch
      %18 = sbr.rel (%p16) target = $region8
    $region5: #{tpu_custom_call.1} parent=1 // loop_body
      %s20 = ssub.s32 %s15, 1
      %s21 = ssub.s32 %s15, 2
      %s28 = sadd.s32 1, %s23
      %p29 = scmp.ge.s32.totalorder %s28, 2
      %s30 = scalar_select %p29, 0, %s28
      %s31 = sadd.s32 1, %s22
      %s32 = scalar_select %p29, %s31, %s22
      %p33 = scmp.ge.s32.totalorder %s32, 1
      %s34 = scalar_select %p33, 0, %s32
      %s35 = ssub.s32 %s22, %s34
      %s36 = ssub.s32 %s23, %s30
      %s37 = sor.u32 %s35, %s36
      %p38 = scmp.eq.s32.totalorder %s37, 0
      %s40 = sadd.s32 %s39, 1
      %s41 = scalar_select %p38, %s39, %s40
      %p44 = pneg %p38
      %p45 = scmp.eq.s32.totalorder %s15, 1
      %p46 = por %p44, %p45
      %p47 = scmp.ne.s32.totalorder %s39, %s42
      %p48 = scmp.eq.s32.totalorder %s15, 0
      %p49 = por %p47, %p48
      %p50 = scmp.ne.s32.totalorder %s39, %s42
      %p51 = scmp.eq.s32.totalorder %s20, 1
      %p52 = por %p50, %p51
      %p53 = scmp.ne.s32.totalorder %s42, %s43
      %p54 = scmp.eq.s32.totalorder %s20, 0
      %p55 = por %p53, %p54
      %p56 = scmp.ne.s32.totalorder %s42, %s43
      %p57 = scmp.eq.s32.totalorder %s21, 1
      %p58 = por %p56, %p57
      %p60 = scmp.ne.s32.totalorder %s43, %s59
      %p61 = scmp.eq.s32.totalorder %s21, 0
      %p62 = por %p60, %p61
      %s63 = ssub.s32 %s22, %s34
      %s64 = ssub.s32 %s23, %s30
      %s65 = sor.u32 %s63, %s64
      %p66 = scmp.eq.s32.totalorder %s65, 0
      %s68 = sadd.s32 %s67, 1
      %s69 = scalar_select %p66, %s67, %s68
      %p72 = pneg %p66
      %p73 = scmp.eq.s32.totalorder %s15, 1
      %p74 = por %p72, %p73
      %p75 = scmp.ne.s32.totalorder %s67, %s70
      %p76 = scmp.eq.s32.totalorder %s15, 0
      %p77 = por %p75, %p76
      %p78 = scmp.ne.s32.totalorder %s67, %s70
      %p79 = scmp.eq.s32.totalorder %s20, 1
      %p80 = por %p78, %p79
      %p81 = scmp.ne.s32.totalorder %s70, %s71
      %p82 = scmp.eq.s32.totalorder %s20, 0
      %p83 = por %p81, %p82
      %p84 = scmp.ne.s32.totalorder %s70, %s71
      %p85 = scmp.eq.s32.totalorder %s21, 1
      %p86 = por %p84, %p85
      %p88 = scmp.ne.s32.totalorder %s71, %s87
      %p89 = scmp.eq.s32.totalorder %s21, 0
      %p90 = por %p88, %p89
      %s92 = sadd.s32 %s91, 1
      %p95 = scmp.eq.s32.totalorder %s15, 1
      %p96 = scmp.ne.s32.totalorder %s91, %s93
      %p97 = scmp.eq.s32.totalorder %s15, 0
      %p98 = por %p96, %p97
      %p99 = scmp.ne.s32.totalorder %s91, %s93
      %p100 = scmp.eq.s32.totalorder %s20, 1
      %p101 = por %p99, %p100
      %p102 = scmp.ne.s32.totalorder %s93, %s94
      %p103 = scmp.eq.s32.totalorder %s20, 0
      %p104 = por %p102, %p103
      %p105 = scmp.ne.s32.totalorder %s93, %s94
      %p106 = scmp.eq.s32.totalorder %s21, 1
      %p107 = por %p105, %p106
      %p109 = scmp.ne.s32.totalorder %s94, %s108
      %p110 = scmp.eq.s32.totalorder %s21, 0
      %p111 = por %p109, %p110
      %s113 = sadd.s32 %s112, 1
      %p116 = scmp.eq.s32.totalorder %s15, 1
      %p117 = scmp.ne.s32.totalorder %s112, %s114
      %p118 = scmp.eq.s32.totalorder %s15, 0
      %p119 = por %p117, %p118
      %p120 = scmp.ne.s32.totalorder %s112, %s114
      %p121 = scmp.eq.s32.totalorder %s20, 1
      %p122 = por %p120, %p121
      %p123 = scmp.ne.s32.totalorder %s114, %s115
      %p124 = scmp.eq.s32.totalorder %s20, 0
      %p125 = por %p123, %p124
      %p126 = scmp.ne.s32.totalorder %s114, %s115
      %p127 = scmp.eq.s32.totalorder %s21, 1
      %p128 = por %p126, %p127
      %p130 = scmp.ne.s32.totalorder %s115, %s129
      %p131 = scmp.eq.s32.totalorder %s21, 0
      %p132 = por %p130, %p131
      %s134 = sadd.s32 %s133, 1
      %p137 = scmp.eq.s32.totalorder %s15, 1
      %p138 = scmp.ne.s32.totalorder %s133, %s135
      %p139 = scmp.eq.s32.totalorder %s15, 0
      %p140 = por %p138, %p139
      %p141 = scmp.ne.s32.totalorder %s133, %s135
      %p142 = scmp.eq.s32.totalorder %s20, 1
      %p143 = por %p141, %p142
      %p144 = scmp.ne.s32.totalorder %s135, %s136
      %p145 = scmp.eq.s32.totalorder %s20, 0
      %p146 = por %p144, %p145
      %p147 = scmp.ne.s32.totalorder %s135, %s136
      %p148 = scmp.eq.s32.totalorder %s21, 1
      %p149 = por %p147, %p148
      %p151 = scmp.ne.s32.totalorder %s136, %s150
      %p152 = scmp.eq.s32.totalorder %s21, 0
      %p153 = por %p151, %p152
      %s155 = sadd.s32 %s154, 1
      %p158 = scmp.eq.s32.totalorder %s15, 1
      %p159 = scmp.ne.s32.totalorder %s154, %s156
      %p160 = scmp.eq.s32.totalorder %s15, 0
      %p161 = por %p159, %p160
      %p162 = scmp.ne.s32.totalorder %s154, %s156
      %p163 = scmp.eq.s32.totalorder %s20, 1
      %p164 = por %p162, %p163
      %p165 = scmp.ne.s32.totalorder %s156, %s157
      %p166 = scmp.eq.s32.totalorder %s20, 0
      %p167 = por %p165, %p166
      %p168 = scmp.ne.s32.totalorder %s156, %s157
      %p169 = scmp.eq.s32.totalorder %s21, 1
      %p170 = por %p168, %p169
      %p172 = scmp.ne.s32.totalorder %s157, %s171
      %p173 = scmp.eq.s32.totalorder %s21, 0
      %p174 = por %p172, %p173
      %s175 = ssub.s32 %s22, %s34
      %p176 = scmp.eq.s32.totalorder %s175, 0
      %s178 = sadd.s32 %s177, 1
      %s179 = scalar_select %p176, %s177, %s178
      %p182 = pneg %p176
      %p183 = scmp.eq.s32.totalorder %s15, 1
      %p184 = por %p182, %p183
      %p185 = scmp.ne.s32.totalorder %s177, %s180
      %p186 = scmp.eq.s32.totalorder %s15, 0
      %p187 = por %p185, %p186
      %p188 = scmp.ne.s32.totalorder %s177, %s180
      %p189 = scmp.eq.s32.totalorder %s20, 1
      %p190 = por %p188, %p189
      %p191 = scmp.ne.s32.totalorder %s180, %s181
      %p192 = scmp.eq.s32.totalorder %s20, 0
      %p193 = por %p191, %p192
      %p194 = scmp.ne.s32.totalorder %s180, %s181
      %p195 = scmp.eq.s32.totalorder %s21, 1
      %p196 = por %p194, %p195
      %p198 = scmp.ne.s32.totalorder %s181, %s197
      %p199 = scmp.eq.s32.totalorder %s21, 0
      %p200 = por %p198, %p199
      %p201 = scmp.le.s32.totalorder 1, %s15
      %p202 = scmp.lt.s32.totalorder %s15, 3
      %p203 = pnand %p201, %p202
      %p204 = pneg %p203
      // Predicated region
      $region9: #{tpu_custom_call.1} parent=5 // pred_check
        _
      $region10: #{tpu_custom_call.1} parent=5 // pred_check_branch
        %206 = sbr.rel (%p203) target = $region12
      $region11: #{tpu_custom_call.1} parent=5 // pred_region
        %s207 = ssub.s32 %s15, 1
        // Predicated region
        $region13: #{tpu_custom_call.1} parent=11 // pred_check
          %p208 = pneg %p104
        $region14: #{tpu_custom_call.1} parent=11 // pred_check_branch
          %210 = sbr.rel (%p208) target = $region16
        $region15: #{tpu_custom_call.1} parent=11 // pred_region
          _
        $region16: #{tpu_custom_call.1} parent=11 // pred_fallthru
          _
        // Predicated region
        $region17: #{tpu_custom_call.1} parent=11 // pred_check
          %p211 = pneg %p125
        $region18: #{tpu_custom_call.1} parent=11 // pred_check_branch
          %213 = sbr.rel (%p211) target = $region20
        $region19: #{tpu_custom_call.1} parent=11 // pred_region
          _
        $region20: #{tpu_custom_call.1} parent=11 // pred_fallthru
          _
        // Predicated region
        $region21: #{tpu_custom_call.1} parent=11 // pred_check
          %p214 = pneg %p146
        $region22: #{tpu_custom_call.1} parent=11 // pred_check_branch
          %216 = sbr.rel (%p214) target = $region24
        $region23: #{tpu_custom_call.1} parent=11 // pred_region
          _
        $region24: #{tpu_custom_call.1} parent=11 // pred_fallthru
          _
        // Predicated region
        $region25: #{tpu_custom_call.1} parent=11 // pred_check
          %p217 = pneg %p167
        $region26: #{tpu_custom_call.1} parent=11 // pred_check_branch
          %219 = sbr.rel (%p217) target = $region28
        $region27: #{tpu_custom_call.1} parent=11 // pred_region
          _
        $region28: #{tpu_custom_call.1} parent=11 // pred_fallthru
          _
      $region12: #{tpu_custom_call.1} parent=5 // pred_fallthru
        _
      %p220 = scmp.lt.s32.totalorder %s15, 2
      // Predicated region
      $region29: #{tpu_custom_call.1} parent=5 // pred_check
        %p221 = pneg %p220
      $region30: #{tpu_custom_call.1} parent=5 // pred_check_branch
        %223 = sbr.rel (%p221) target = $region32
      $region31: #{tpu_custom_call.1} parent=5 // pred_region
        // Predicated region
        $region33: #{tpu_custom_call.1} parent=31 // pred_check
          %p224 = pneg %p49
        $region34: #{tpu_custom_call.1} parent=31 // pred_check_branch
          %226 = sbr.rel (%p224) target = $region36
        $region35: #{tpu_custom_call.1} parent=31 // pred_region
          %s227 = sand.u32 %s39, 1
          %s228 = sand.u32 %s39, 1
          %s229 = smul.addr %s228, 16
          %s230 = scalar_lea.vmem [#allocation7], %s229
          %s231 = smul.u32 2, %s22
          %s232 = smul.addr %s231, 2
          %s233 = sadd.s32 %s23, %s232
          %s234 = smul.addr %s233, 8
          %s235 = scalar_lea.vmem %s0, %s234
          // Predicated region
          $region37: #{tpu_custom_call.1} parent=35 // pred_check
            _
          $region38: #{tpu_custom_call.1} parent=35 // pred_check_branch
            %237 = sbr.rel (0) target = $region40
          $region39: #{tpu_custom_call.1} parent=35 // pred_region
            // Predicated region
            $region41: #{tpu_custom_call.1} parent=39 // pred_check
              _
            $region42: #{tpu_custom_call.1} parent=39 // pred_check_branch
              %239 = sbr.rel (0) target = $region44
            $region43: #{tpu_custom_call.1} parent=39 // pred_region
              // Predicated region
              $region56: #{tpu_custom_call.1} parent=43 // pred_check
                _
              $region57: #{tpu_custom_call.1} parent=43 // pred_check_branch
                %256 = sbr.rel (0) target = $region59
              $region58: #{tpu_custom_call.1} parent=43 // pred_region
                loop: start=0, step=1, limit=1
                $region60: #{tpu_custom_call.1} parent=58 // loop_pre_header
                  _
                $region61: #{tpu_custom_call.1} parent=58 // loop_header
                  %s258 = sphi 0, %s262
                  %p259 = scmp.ge.s32.totalorder %s258, 1
                  %s263 = sphi %s235, %s235
                  %s264 = sphi %s230, %s230
                $region62: #{tpu_custom_call.1} parent=58 // loop_header_branch
                  %261 = sbr.rel (%p259) target = $region66
                $region63: #{tpu_custom_call.1} parent=58 // loop_body
                  %v265 = vld [vmem:[%s263] sm:$0xff]
                  %266 = vst [vmem:[%s264] sm:$0xff] %v265
                  %v267 = vld [vmem:[%s263 + $0x10] sm:$0xff]
                  %268 = vst [vmem:[%s264 + $0x8] sm:$0xff] %v267
                $region64: #{tpu_custom_call.1} parent=58 // loop_footer
                  %s262 = sadd.s32 1, %s258
                $region65: #{tpu_custom_call.1} parent=58 // loop_footer_branch
                  %257 = sbr.rel target = $region61
                $region66: #{tpu_custom_call.1} parent=58 // loop_exit
                  _
              $region59: #{tpu_custom_call.1} parent=43 // pred_fallthru
                _
              // Predicated region
              $region67: #{tpu_custom_call.1} parent=43 // pred_check
                _
              $region68: #{tpu_custom_call.1} parent=43 // pred_check_branch
                %270 = sbr.rel target = $region70
              $region69: #{tpu_custom_call.1} parent=43 // pred_region
                _
              $region70: #{tpu_custom_call.1} parent=43 // pred_fallthru
                _
            $region44: #{tpu_custom_call.1} parent=39 // pred_fallthru
              _
            // Predicated region
            $region45: #{tpu_custom_call.1} parent=39 // pred_check
              _
            $region46: #{tpu_custom_call.1} parent=39 // pred_check_branch
              %241 = sbr.rel target = $region48
            $region47: #{tpu_custom_call.1} parent=39 // pred_region
              loop: start=0, step=1, limit=1
              $region49: #{tpu_custom_call.1} parent=47 // loop_pre_header
                _
              $region50: #{tpu_custom_call.1} parent=47 // loop_header
                %s244 = sphi 0, %s248
                %p245 = scmp.ge.s32.totalorder %s244, 1
                %s249 = sphi %s235, %s235
                %s250 = sphi %s230, %s230
              $region51: #{tpu_custom_call.1} parent=47 // loop_header_branch
                %247 = sbr.rel (%p245) target = $region55
              $region52: #{tpu_custom_call.1} parent=47 // loop_body
                %v251 = vld [vmem:[%s249] sm:$0xff]
                %252 = vst [vmem:[%s250] sm:$0xff] %v251
                %v253 = vld [vmem:[%s249 + $0x10] sm:$0xff]
                %254 = vst [vmem:[%s250 + $0x8] sm:$0xff] %v253
              $region53: #{tpu_custom_call.1} parent=47 // loop_footer
                %s248 = sadd.s32 1, %s244
              $region54: #{tpu_custom_call.1} parent=47 // loop_footer_branch
                %243 = sbr.rel target = $region50
              $region55: #{tpu_custom_call.1} parent=47 // loop_exit
                _
            $region48: #{tpu_custom_call.1} parent=39 // pred_fallthru
              _
          $region40: #{tpu_custom_call.1} parent=35 // pred_fallthru
            _
          %271 = vnop
        $region36: #{tpu_custom_call.1} parent=31 // pred_fallthru
          _
        // Predicated region
        $region71: #{tpu_custom_call.1} parent=31 // pred_check
          %p272 = pneg %p77
        $region72: #{tpu_custom_call.1} parent=31 // pred_check_branch
          %274 = sbr.rel (%p272) target = $region74
        $region73: #{tpu_custom_call.1} parent=31 // pred_region
          %s275 = sand.u32 %s67, 1
          %s276 = sand.u32 %s67, 1
          %s277 = smul.addr %s276, 16
          %s278 = scalar_lea.vmem [#allocation8], %s277
          %s279 = smul.u32 2, %s22
          %s280 = smul.addr %s279, 2
          %s281 = sadd.s32 %s23, %s280
          %s282 = smul.addr %s281, 8
          %s283 = scalar_lea.vmem %s1, %s282
          // Predicated region
          $region75: #{tpu_custom_call.1} parent=73 // pred_check
            _
          $region76: #{tpu_custom_call.1} parent=73 // pred_check_branch
            %285 = sbr.rel (0) target = $region78
          $region77: #{tpu_custom_call.1} parent=73 // pred_region
            // Predicated region
            $region79: #{tpu_custom_call.1} parent=77 // pred_check
              _
            $region80: #{tpu_custom_call.1} parent=77 // pred_check_branch
              %287 = sbr.rel (0) target = $region82
            $region81: #{tpu_custom_call.1} parent=77 // pred_region
              // Predicated region
              $region94: #{tpu_custom_call.1} parent=81 // pred_check
                _
              $region95: #{tpu_custom_call.1} parent=81 // pred_check_branch
                %304 = sbr.rel (0) target = $region97
              $region96: #{tpu_custom_call.1} parent=81 // pred_region
                loop: start=0, step=1, limit=1
                $region98: #{tpu_custom_call.1} parent=96 // loop_pre_header
                  _
                $region99: #{tpu_custom_call.1} parent=96 // loop_header
                  %s306 = sphi 0, %s310
                  %p307 = scmp.ge.s32.totalorder %s306, 1
                  %s311 = sphi %s283, %s283
                  %s312 = sphi %s278, %s278
                $region100: #{tpu_custom_call.1} parent=96 // loop_header_branch
                  %309 = sbr.rel (%p307) target = $region104
                $region101: #{tpu_custom_call.1} parent=96 // loop_body
                  %v313 = vld [vmem:[%s311] sm:$0xff]
                  %314 = vst [vmem:[%s312] sm:$0xff] %v313
                  %v315 = vld [vmem:[%s311 + $0x10] sm:$0xff]
                  %316 = vst [vmem:[%s312 + $0x8] sm:$0xff] %v315
                $region102: #{tpu_custom_call.1} parent=96 // loop_footer
                  %s310 = sadd.s32 1, %s306
                $region103: #{tpu_custom_call.1} parent=96 // loop_footer_branch
                  %305 = sbr.rel target = $region99
                $region104: #{tpu_custom_call.1} parent=96 // loop_exit
                  _
              $region97: #{tpu_custom_call.1} parent=81 // pred_fallthru
                _
              // Predicated region
              $region105: #{tpu_custom_call.1} parent=81 // pred_check
                _
              $region106: #{tpu_custom_call.1} parent=81 // pred_check_branch
                %318 = sbr.rel target = $region108
              $region107: #{tpu_custom_call.1} parent=81 // pred_region
                _
              $region108: #{tpu_custom_call.1} parent=81 // pred_fallthru
                _
            $region82: #{tpu_custom_call.1} parent=77 // pred_fallthru
              _
            // Predicated region
            $region83: #{tpu_custom_call.1} parent=77 // pred_check
              _
            $region84: #{tpu_custom_call.1} parent=77 // pred_check_branch
              %289 = sbr.rel target = $region86
            $region85: #{tpu_custom_call.1} parent=77 // pred_region
              loop: start=0, step=1, limit=1
              $region87: #{tpu_custom_call.1} parent=85 // loop_pre_header
                _
              $region88: #{tpu_custom_call.1} parent=85 // loop_header
                %s292 = sphi 0, %s296
                %p293 = scmp.ge.s32.totalorder %s292, 1
                %s297 = sphi %s283, %s283
                %s298 = sphi %s278, %s278
              $region89: #{tpu_custom_call.1} parent=85 // loop_header_branch
                %295 = sbr.rel (%p293) target = $region93
              $region90: #{tpu_custom_call.1} parent=85 // loop_body
                %v299 = vld [vmem:[%s297] sm:$0xff]
                %300 = vst [vmem:[%s298] sm:$0xff] %v299
                %v301 = vld [vmem:[%s297 + $0x10] sm:$0xff]
                %302 = vst [vmem:[%s298 + $0x8] sm:$0xff] %v301
              $region91: #{tpu_custom_call.1} parent=85 // loop_footer
                %s296 = sadd.s32 1, %s292
              $region92: #{tpu_custom_call.1} parent=85 // loop_footer_branch
                %291 = sbr.rel target = $region88
              $region93: #{tpu_custom_call.1} parent=85 // loop_exit
                _
            $region86: #{tpu_custom_call.1} parent=77 // pred_fallthru
              _
          $region78: #{tpu_custom_call.1} parent=73 // pred_fallthru
            _
          %319 = vnop
        $region74: #{tpu_custom_call.1} parent=31 // pred_fallthru
          _
      $region32: #{tpu_custom_call.1} parent=5 // pred_fallthru
        _
      %p320 = scmp.le.s32.totalorder 1, %s15
      %p321 = scmp.lt.s32.totalorder %s15, 3
      %p322 = pnand %p320, %p321
      %p323 = pneg %p322
      // Predicated region
      $region109: #{tpu_custom_call.1} parent=5 // pred_check
        _
      $region110: #{tpu_custom_call.1} parent=5 // pred_check_branch
        %325 = sbr.rel (%p322) target = $region112
      $region111: #{tpu_custom_call.1} parent=5 // pred_region
        %s326 = ssub.s32 %s15, 1
        %s327 = sand.u32 %s42, 1
        %s328 = sand.u32 %s42, 1
        %s329 = smul.addr %s328, 16
        %s330 = scalar_lea.vmem [#allocation7], %s329
        // Predicated region
        $region113: #{tpu_custom_call.1} parent=111 // pred_check
          %p331 = pneg %p55
        $region114: #{tpu_custom_call.1} parent=111 // pred_check_branch
          %333 = sbr.rel (%p331) target = $region116
        $region115: #{tpu_custom_call.1} parent=111 // pred_region
          _
        $region116: #{tpu_custom_call.1} parent=111 // pred_fallthru
          _
        %s334 = sand.u32 %s70, 1
        %s335 = sand.u32 %s70, 1
        %s336 = smul.addr %s335, 16
        %s337 = scalar_lea.vmem [#allocation8], %s336
        // Predicated region
        $region117: #{tpu_custom_call.1} parent=111 // pred_check
          %p338 = pneg %p83
        $region118: #{tpu_custom_call.1} parent=111 // pred_check_branch
          %340 = sbr.rel (%p338) target = $region120
        $region119: #{tpu_custom_call.1} parent=111 // pred_region
          _
        $region120: #{tpu_custom_call.1} parent=111 // pred_fallthru
          _
        %s341 = sand.u32 %s42, 1
        %s342 = sand.u32 %s42, 1
        %s343 = smul.addr %s342, 16
        %s344 = scalar_lea.vmem [#allocation7], %s343
        %p345 = pneg %p55
        %p346 = pneg %p52
        %s347 = sand.u32 %s70, 1
        %s348 = sand.u32 %s70, 1
        %s349 = smul.addr %s348, 16
        %s350 = scalar_lea.vmem [#allocation8], %s349
        %p351 = pneg %p83
        %p352 = pneg %p80
        %p353 = pneg %p104
        %p354 = pneg %p101
        %p355 = pneg %p125
        %p356 = pneg %p122
        %p357 = pneg %p146
        %p358 = pneg %p143
        %p359 = pneg %p167
        %p360 = pneg %p164
        %p361 = pneg %p193
        %p362 = pneg %p190
        %s363 = smul.u32 2, %s24
        %s364 = smul.u32 2, %s24
        %p365 = scmp.eq.s32.totalorder %s25, 0
        // Predicated region
        $region121: #{tpu_custom_call.1} parent=111 // pred_check
          %p366 = pneg %p365
        $region122: #{tpu_custom_call.1} parent=111 // pred_check_branch
          %368 = sbr.rel (%p366) target = $region124
        $region123: #{tpu_custom_call.1} parent=111 // pred_region
          %vm369 = vcmask 1024
          %370 = vst.msk [vmem:[#allocation2] sm:$0x3] %vm369, -1e+30
          %371 = vst.msk [vmem:[#allocation3] sm:$0x3] %vm369, 0.0
          %vm372 = vcmask 254976
          %373 = vst.msk [vmem:[#allocation4] sm:$0x3] %vm372, 0.0
          %374 = vst.msk [vmem:[#allocation5] sm:$0x3] %vm372, 0.0
        $region124: #{tpu_custom_call.1} parent=111 // pred_fallthru
          _
        %v375 = vld [vmem:[%s330] sm:$0xff]
        %v376 = vld [vmem:[%s330 + $0x8] sm:$0xff]
        %v377 = vld [vmem:[%s2] sm:$0xff]
        %v378 = vld [vmem:[%s2 + $0x8] sm:$0xff]
        %v379 = vld [vmem:[%s2 + $0x10] sm:$0xff]
        %v380 = vld [vmem:[%s2 + $0x18] sm:$0xff]
        %v381 = vld [vmem:[%s3] sm:$0x1]
        %v383 = vlaneseq
        %v384 = vshrl.u32 %v383, 7
        %v385 = vsub.s32 0, %v384
        %v386 = vrot.slane %v381, %v385
        %vm388 = vcmask 261120
        %v390 = vsel %vm388, %v375, 0
        %v393 = vsel %vm388, %v376, 0
        %395 = vmatprep.subr.mxu0 0.0
        %396 = vmatpush1.msra.mxu0 %v377
        %397 = vmatprep.subr.mxu0 0.0
        %398 = vmatpush1.msra.mxu0 %v378
        %399 = vmatprep.subr.mxu0 0.0
        %400 = vmatpush1.msra.mxu0 %v379
        %401 = vmatprep.subr.mxu0 0.0
        %402 = vmatpush1.msra.mxu0 %v380
        %403 = vmatprep.subr.mxu0 0.0
        %404 = vmatpush1.msra.mxu0 0.0
        %405 = vmatprep.subr.mxu0 0.0
        %406 = vmatpush1.msra.mxu0 0.0
        %407 = vmatprep.subr.mxu0 0.0
        %408 = vmatpush1.msra.mxu0 0.0
        %409 = vmatprep.subr.mxu0 0.0
        %410 = vmatpush1.msra.mxu0 0.0
        %411 = vmatprep.subr.mxu0 0.0
        %412 = vmatpush1.msra.mxu0 0.0
        %413 = vmatprep.subr.mxu0 0.0
        %414 = vmatpush1.msra.mxu0 0.0
        %415 = vmatprep.subr.mxu0 0.0
        %416 = vmatpush1.msra.mxu0 0.0
        %417 = vmatprep.subr.mxu0 0.0
        %418 = vmatpush1.msra.mxu0 0.0
        %419 = vmatprep.subr.mxu0 0.0
        %420 = vmatpush1.msra.mxu0 0.0
        %421 = vmatprep.subr.mxu0 0.0
        %422 = vmatpush1.msra.mxu0 0.0
        %423 = vmatprep.subr.mxu0 0.0
        %424 = vmatpush1.msra.mxu0 0.0
        %425 = vmatprep.subr.mxu0 0.0
        %426 = vmatpush1.msra.mxu0 0.0
        %427 = vmatprep.subr.mxu0 0.0
        %428 = vmatpush1.msra.mxu0 0.0
        %429 = vmatprep.subr.mxu0 0.0
        %430 = vmatpush1.msra.mxu0 0.0
        %431 = vmatprep.subr.mxu0 0.0
        %432 = vmatpush1.msra.mxu0 0.0
        %433 = vmatprep.subr.mxu0 0.0
        %434 = vmatpush1.msra.mxu0 0.0
        %435 = vmatprep.subr.mxu0 0.0
        %436 = vmatpush1.msra.mxu0 0.0
        %437 = vmatprep.subr.mxu0 0.0
        %438 = vmatpush1.msra.mxu0 0.0
        %439 = vmatprep.subr.mxu0 0.0
        %440 = vmatpush1.msra.mxu0 0.0
        %441 = vmatprep.subr.mxu0 0.0
        %442 = vmatpush1.msra.mxu0 0.0
        %443 = vmatprep.subr.mxu0 0.0
        %444 = vmatpush1.msra.mxu0 0.0
        %445 = vmatprep.subr.mxu0 0.0
        %446 = vmatpush1.msra.mxu0 0.0
        %447 = vmatprep.subr.mxu0 0.0
        %448 = vmatpush1.msra.mxu0 0.0
        %449 = vmatprep.subr.mxu0 0.0
        %450 = vmatpush1.msra.mxu0 0.0
        %451 = vmatprep.subr.mxu0 0.0
        %452 = vmatpush1.msra.mxu0 0.0
        %453 = vmatprep.subr.mxu0 0.0
        %454 = vmatpush1.msra.mxu0 0.0
        %455 = vmatprep.subr.mxu0 0.0
        %456 = vmatpush1.msra.mxu0 0.0
        %457 = vmatprep.subr.mxu0 0.0
        %458 = vmatpush1.msra.mxu0 0.0
        %459 = vmatprep.mubr.f32.mxu0 0.0
        %460 = vmatmul.mubr.f32.gmra.mrb[0].mxu0 %v390
        %v461 = vpop.f32.mrb[0].mxu0
        %v462 = vadd.f32 %v386, %v461
        %v463 = vpop.f32.mrb[0].mxu0
        %464 = vmatprep.mubr.f32.mxu0 0.0
        %465 = vmatmul.mubr.f32.gmra.mrb[0].mxu0 %v393
        %v466 = vpop.f32.mrb[0].mxu0
        %v467 = vadd.f32 %v386, %v466
        %v468 = vpop.f32.mrb[0].mxu0
        %469 = vdwg.mxu0
        %v470 = vtanh.pop %v462
        %v471 = vtanh.pop %v467
        %v472 = vld [vmem:[%s4] sm:$0x1]
        %v474 = vlaneseq
        %v475 = vshrl.u32 %v474, 7
        %v476 = vsub.s32 0, %v475
        %v477 = vrot.slane %v472, %v476
        %v479 = vmul.f32 %v470, %v477
        %v480 = vmul.f32 %v471, %v477
        %vm481 = vcmask 64512
        %v482 = vsel %vm481, %v479, 0.0
        %483 = vadd.xlane.f32.xlu0 %v482
        %v484 = vpop.xlane.xlu0 %483
        %v485 = vsel %vm481, %v480, 0.0
        %486 = vadd.xlane.f32.xlu0 %v485
        %v487 = vpop.xlane.xlu0 %486
        %v488 = vld [vmem:[#allocation6] sm:$0x1]
        %v490 = vlaneseq
        %v491 = vshrl.u32 %v490, 7
        %v492 = vsub.s32 0, %v491
        %v493 = vrot.slane %v488, %v492
        %494 = vset.pattern.permute.xlu0 0
        %495 = vperm.xlu0 %494, %v493
        %v496 = vpop.permute.xlu0 %495
        %v498 = vadd.f32 %v484, %v496
        %v499 = vadd.f32 %v487, %v496
        %v500 = vld [vmem:[%s337] sm:$0xff]
        %v501 = vld [vmem:[%s337 + $0x8] sm:$0xff]
        %vm502 = vcmp.gt.f32.partialorder %v500, 0.0
        %vm503 = vcmp.gt.f32.partialorder %v501, 0.0
        %v504 = vsel %vm502, %v498, -1e+09
        %v505 = vsel %vm503, %v499, -1e+09
        %508 = vset.pattern.permute.xlu0 0
        %509 = vperm.xlu0 %508, %v504
        %v510 = vpop.permute.xlu0 %509
        %511 = vset.pattern.permute.xlu0 0
        %512 = vperm.xlu0 %511, %v505
        %v513 = vpop.permute.xlu0 %512
        %v514 = vlaneseq
        %v515 = vand.u32 %v514, 127
        %v516 = vlaneseq
        %v517 = vshrl.u32 %v516, 7
        %v518 = vsub.s32 %v515, %v517
        %v519 = vrot.slane %v510, %v518
        %v520 = vlaneseq
        %v521 = vshrl.u32 %v520, 7
        %v522 = vsub.s32 %v515, %v521
        %v523 = vrot.slane %v513, %v522
        %vm524 = vcmask 1041409
        %v525 = vsel %vm524, %v523, %v519
        %vm527 = vcmask 58368
        %v528 = vsel %vm527, %v525, -inf
        %529 = vmax.xlane.f32.xlu0 %v528
        %v530 = vpop.xlane.xlu0 %529
        %v531 = vld [vmem:[#allocation2] sm:$0x3]
        %v532 = vmax.f32 %v531, %v530
        %v533 = vsub.f32 %v531, %v532
        %v534 = vmul.f32 %v533, 1.442695
        %v535 = vpow.pop %v534
        %537 = vset.pattern.permute.xlu0 0
        %538 = vperm.xlu0 %537, %v532
        %v539 = vpop.permute.xlu0 %538
        %v540 = vlaneseq
        %v541 = vshrl.u32 %v540, 7
        %v542 = vsub.s32 0, %v541
        %v543 = vrot.slane %v539, %v542
        %v544 = vlaneseq
        %v545 = vshrl.u32 %v544, 7
        %v546 = vsub.s32 1, %v545
        %v547 = vrot.slane %v539, %v546
        %v550 = vsub.f32 %v504, %v543
        %v551 = vsub.f32 %v505, %v547
        %v552 = vmul.f32 %v550, 1.442695
        %v553 = vpow.pop %v552
        %v554 = vmul.f32 %v551, 1.442695
        %v555 = vpow.pop %v554
        %557 = vset.pattern.permute.xlu0 0
        %558 = vperm.xlu0 %557, %v553
        %v559 = vpop.permute.xlu0 %558
        %v560 = vlaneseq
        %v561 = vshrl.u32 %v560, 7
        %v562 = vsub.s32 %v515, %v561
        %v563 = vrot.slane %v559, %v562
        %v564 = vsel %vm481, %v563, 0
        %566 = vmatprep.subr.mxu0 0.0
        %567 = vmatpush1.msra.mxu0 %v375
        %568 = vmatprep.subr.mxu0 0.0
        %569 = vmatpush1.msra.mxu0 0.0
        %570 = vmatprep.subr.mxu0 0.0
        %571 = vmatpush1.msra.mxu0 0.0
        %572 = vmatprep.subr.mxu0 0.0
        %573 = vmatpush1.msra.mxu0 0.0
        %574 = vmatprep.subr.mxu0 0.0
        %575 = vmatpush1.msra.mxu0 0.0
        %576 = vmatprep.subr.mxu0 0.0
        %577 = vmatpush1.msra.mxu0 0.0
        %578 = vmatprep.subr.mxu0 0.0
        %579 = vmatpush1.msra.mxu0 0.0
        %580 = vmatprep.subr.mxu0 0.0
        %581 = vmatpush1.msra.mxu0 0.0
        %582 = vmatprep.subr.mxu0 0.0
        %583 = vmatpush1.msra.mxu0 0.0
        %584 = vmatprep.subr.mxu0 0.0
        %585 = vmatpush1.msra.mxu0 0.0
        %586 = vmatprep.subr.mxu0 0.0
        %587 = vmatpush1.msra.mxu0 0.0
        %588 = vmatprep.subr.mxu0 0.0
        %589 = vmatpush1.msra.mxu0 0.0
        %590 = vmatprep.subr.mxu0 0.0
        %591 = vmatpush1.msra.mxu0 0.0
        %592 = vmatprep.subr.mxu0 0.0
        %593 = vmatpush1.msra.mxu0 0.0
        %594 = vmatprep.subr.mxu0 0.0
        %595 = vmatpush1.msra.mxu0 0.0
        %596 = vmatprep.subr.mxu0 0.0
        %597 = vmatpush1.msra.mxu0 0.0
        %598 = vmatprep.subr.mxu0 0.0
        %599 = vmatpush1.msra.mxu0 0.0
        %600 = vmatprep.subr.mxu0 0.0
        %601 = vmatpush1.msra.mxu0 0.0
        %602 = vmatprep.subr.mxu0 0.0
        %603 = vmatpush1.msra.mxu0 0.0
        %604 = vmatprep.subr.mxu0 0.0
        %605 = vmatpush1.msra.mxu0 0.0
        %606 = vmatprep.subr.mxu0 0.0
        %607 = vmatpush1.msra.mxu0 0.0
        %608 = vmatprep.subr.mxu0 0.0
        %609 = vmatpush1.msra.mxu0 0.0
        %610 = vmatprep.subr.mxu0 0.0
        %611 = vmatpush1.msra.mxu0 0.0
        %612 = vmatprep.subr.mxu0 0.0
        %613 = vmatpush1.msra.mxu0 0.0
        %614 = vmatprep.subr.mxu0 0.0
        %615 = vmatpush1.msra.mxu0 0.0
        %616 = vmatprep.subr.mxu0 0.0
        %617 = vmatpush1.msra.mxu0 0.0
        %618 = vmatprep.subr.mxu0 0.0
        %619 = vmatpush1.msra.mxu0 0.0
        %620 = vmatprep.subr.mxu0 0.0
        %621 = vmatpush1.msra.mxu0 0.0
        %622 = vmatprep.subr.mxu0 0.0
        %623 = vmatpush1.msra.mxu0 0.0
        %624 = vmatprep.subr.mxu0 0.0
        %625 = vmatpush1.msra.mxu0 0.0
        %626 = vmatprep.subr.mxu0 0.0
        %627 = vmatpush1.msra.mxu0 0.0
        %628 = vmatprep.subr.mxu0 0.0
        %629 = vmatpush1.msra.mxu0 0.0
        %630 = vmatprep.mubr.f32.mxu0 0.0
        %631 = vmatmul.mubr.f32.gmra.mrb[0].mxu0 %v564
        %v632 = vpop.f32.mrb[0].mxu0
        %v633 = vadd.f32 0.0, %v632
        %v634 = vpop.f32.mrb[0].mxu0
        %635 = vdwg.mxu0
        %637 = vset.pattern.permute.xlu0 0
        %638 = vperm.xlu0 %637, %v555
        %v639 = vpop.permute.xlu0 %638
        %v640 = vlaneseq
        %v641 = vshrl.u32 %v640, 7
        %v642 = vsub.s32 %v515, %v641
        %v643 = vrot.slane %v639, %v642
        %v644 = vsel %vm481, %v643, 0
        %646 = vmatprep.subr.mxu0 0.0
        %647 = vmatpush1.msra.mxu0 %v376
        %648 = vmatprep.subr.mxu0 0.0
        %649 = vmatpush1.msra.mxu0 0.0
        %650 = vmatprep.subr.mxu0 0.0
        %651 = vmatpush1.msra.mxu0 0.0
        %652 = vmatprep.subr.mxu0 0.0
        %653 = vmatpush1.msra.mxu0 0.0
        %654 = vmatprep.subr.mxu0 0.0
        %655 = vmatpush1.msra.mxu0 0.0
        %656 = vmatprep.subr.mxu0 0.0
        %657 = vmatpush1.msra.mxu0 0.0
        %658 = vmatprep.subr.mxu0 0.0
        %659 = vmatpush1.msra.mxu0 0.0
        %660 = vmatprep.subr.mxu0 0.0
        %661 = vmatpush1.msra.mxu0 0.0
        %662 = vmatprep.subr.mxu0 0.0
        %663 = vmatpush1.msra.mxu0 0.0
        %664 = vmatprep.subr.mxu0 0.0
        %665 = vmatpush1.msra.mxu0 0.0
        %666 = vmatprep.subr.mxu0 0.0
        %667 = vmatpush1.msra.mxu0 0.0
        %668 = vmatprep.subr.mxu0 0.0
        %669 = vmatpush1.msra.mxu0 0.0
        %670 = vmatprep.subr.mxu0 0.0
        %671 = vmatpush1.msra.mxu0 0.0
        %672 = vmatprep.subr.mxu0 0.0
        %673 = vmatpush1.msra.mxu0 0.0
        %674 = vmatprep.subr.mxu0 0.0
        %675 = vmatpush1.msra.mxu0 0.0
        %676 = vmatprep.subr.mxu0 0.0
        %677 = vmatpush1.msra.mxu0 0.0
        %678 = vmatprep.subr.mxu0 0.0
        %679 = vmatpush1.msra.mxu0 0.0
        %680 = vmatprep.subr.mxu0 0.0
        %681 = vmatpush1.msra.mxu0 0.0
        %682 = vmatprep.subr.mxu0 0.0
        %683 = vmatpush1.msra.mxu0 0.0
        %684 = vmatprep.subr.mxu0 0.0
        %685 = vmatpush1.msra.mxu0 0.0
        %686 = vmatprep.subr.mxu0 0.0
        %687 = vmatpush1.msra.mxu0 0.0
        %688 = vmatprep.subr.mxu0 0.0
        %689 = vmatpush1.msra.mxu0 0.0
        %690 = vmatprep.subr.mxu0 0.0
        %691 = vmatpush1.msra.mxu0 0.0
        %692 = vmatprep.subr.mxu0 0.0
        %693 = vmatpush1.msra.mxu0 0.0
        %694 = vmatprep.subr.mxu0 0.0
        %695 = vmatpush1.msra.mxu0 0.0
        %696 = vmatprep.subr.mxu0 0.0
        %697 = vmatpush1.msra.mxu0 0.0
        %698 = vmatprep.subr.mxu0 0.0
        %699 = vmatpush1.msra.mxu0 0.0
        %700 = vmatprep.subr.mxu0 0.0
        %701 = vmatpush1.msra.mxu0 0.0
        %702 = vmatprep.subr.mxu0 0.0
        %703 = vmatpush1.msra.mxu0 0.0
        %704 = vmatprep.subr.mxu0 0.0
        %705 = vmatpush1.msra.mxu0 0.0
        %706 = vmatprep.subr.mxu0 0.0
        %707 = vmatpush1.msra.mxu0 0.0
        %708 = vmatprep.subr.mxu0 0.0
        %709 = vmatpush1.msra.mxu0 0.0
        %710 = vmatprep.mubr.f32.mxu0 0.0
        %711 = vmatmul.mubr.f32.gmra.mrb[0].mxu0 %v644
        %v712 = vpop.f32.mrb[0].mxu0
        %v713 = vadd.f32 0.0, %v712
        %v714 = vpop.f32.mrb[0].mxu0
        %715 = vdwg.mxu0
        %v716 = vmul.f32 %v375, %v375
        %v717 = vmul.f32 %v376, %v376
        %718 = vmatprep.subr.mxu0 0.0
        %719 = vmatpush1.msra.mxu0 %v716
        %720 = vmatprep.subr.mxu0 0.0
        %721 = vmatpush1.msra.mxu0 0.0
        %722 = vmatprep.subr.mxu0 0.0
        %723 = vmatpush1.msra.mxu0 0.0
        %724 = vmatprep.subr.mxu0 0.0
        %725 = vmatpush1.msra.mxu0 0.0
        %726 = vmatprep.subr.mxu0 0.0
        %727 = vmatpush1.msra.mxu0 0.0
        %728 = vmatprep.subr.mxu0 0.0
        %729 = vmatpush1.msra.mxu0 0.0
        %730 = vmatprep.subr.mxu0 0.0
        %731 = vmatpush1.msra.mxu0 0.0
        %732 = vmatprep.subr.mxu0 0.0
        %733 = vmatpush1.msra.mxu0 0.0
        %734 = vmatprep.subr.mxu0 0.0
        %735 = vmatpush1.msra.mxu0 0.0
        %736 = vmatprep.subr.mxu0 0.0
        %737 = vmatpush1.msra.mxu0 0.0
        %738 = vmatprep.subr.mxu0 0.0
        %739 = vmatpush1.msra.mxu0 0.0
        %740 = vmatprep.subr.mxu0 0.0
        %741 = vmatpush1.msra.mxu0 0.0
        %742 = vmatprep.subr.mxu0 0.0
        %743 = vmatpush1.msra.mxu0 0.0
        %744 = vmatprep.subr.mxu0 0.0
        %745 = vmatpush1.msra.mxu0 0.0
        %746 = vmatprep.subr.mxu0 0.0
        %747 = vmatpush1.msra.mxu0 0.0
        %748 = vmatprep.subr.mxu0 0.0
        %749 = vmatpush1.msra.mxu0 0.0
        %750 = vmatprep.subr.mxu0 0.0
        %751 = vmatpush1.msra.mxu0 0.0
        %752 = vmatprep.subr.mxu0 0.0
        %753 = vmatpush1.msra.mxu0 0.0
        %754 = vmatprep.subr.mxu0 0.0
        %755 = vmatpush1.msra.mxu0 0.0
        %756 = vmatprep.subr.mxu0 0.0
        %757 = vmatpush1.msra.mxu0 0.0
        %758 = vmatprep.subr.mxu0 0.0
        %759 = vmatpush1.msra.mxu0 0.0
        %760 = vmatprep.subr.mxu0 0.0
        %761 = vmatpush1.msra.mxu0 0.0
        %762 = vmatprep.subr.mxu0 0.0
        %763 = vmatpush1.msra.mxu0 0.0
        %764 = vmatprep.subr.mxu0 0.0
        %765 = vmatpush1.msra.mxu0 0.0
        %766 = vmatprep.subr.mxu0 0.0
        %767 = vmatpush1.msra.mxu0 0.0
        %768 = vmatprep.subr.mxu0 0.0
        %769 = vmatpush1.msra.mxu0 0.0
        %770 = vmatprep.subr.mxu0 0.0
        %771 = vmatpush1.msra.mxu0 0.0
        %772 = vmatprep.subr.mxu0 0.0
        %773 = vmatpush1.msra.mxu0 0.0
        %774 = vmatprep.subr.mxu0 0.0
        %775 = vmatpush1.msra.mxu0 0.0
        %776 = vmatprep.subr.mxu0 0.0
        %777 = vmatpush1.msra.mxu0 0.0
        %778 = vmatprep.subr.mxu0 0.0
        %779 = vmatpush1.msra.mxu0 0.0
        %780 = vmatprep.subr.mxu0 0.0
        %781 = vmatpush1.msra.mxu0 0.0
        %782 = vmatprep.mubr.f32.mxu0 0.0
        %783 = vmatmul.mubr.f32.gmra.mrb[0].mxu0 %v564
        %v784 = vpop.f32.mrb[0].mxu0
        %v785 = vadd.f32 0.0, %v784
        %v786 = vpop.f32.mrb[0].mxu0
        %787 = vdwg.mxu0
        %788 = vmatprep.subr.mxu0 0.0
        %789 = vmatpush1.msra.mxu0 %v717
        %790 = vmatprep.subr.mxu0 0.0
        %791 = vmatpush1.msra.mxu0 0.0
        %792 = vmatprep.subr.mxu0 0.0
        %793 = vmatpush1.msra.mxu0 0.0
        %794 = vmatprep.subr.mxu0 0.0
        %795 = vmatpush1.msra.mxu0 0.0
        %796 = vmatprep.subr.mxu0 0.0
        %797 = vmatpush1.msra.mxu0 0.0
        %798 = vmatprep.subr.mxu0 0.0
        %799 = vmatpush1.msra.mxu0 0.0
        %800 = vmatprep.subr.mxu0 0.0
        %801 = vmatpush1.msra.mxu0 0.0
        %802 = vmatprep.subr.mxu0 0.0
        %803 = vmatpush1.msra.mxu0 0.0
        %804 = vmatprep.subr.mxu0 0.0
        %805 = vmatpush1.msra.mxu0 0.0
        %806 = vmatprep.subr.mxu0 0.0
        %807 = vmatpush1.msra.mxu0 0.0
        %808 = vmatprep.subr.mxu0 0.0
        %809 = vmatpush1.msra.mxu0 0.0
        %810 = vmatprep.subr.mxu0 0.0
        %811 = vmatpush1.msra.mxu0 0.0
        %812 = vmatprep.subr.mxu0 0.0
        %813 = vmatpush1.msra.mxu0 0.0
        %814 = vmatprep.subr.mxu0 0.0
        %815 = vmatpush1.msra.mxu0 0.0
        %816 = vmatprep.subr.mxu0 0.0
        %817 = vmatpush1.msra.mxu0 0.0
        %818 = vmatprep.subr.mxu0 0.0
        %819 = vmatpush1.msra.mxu0 0.0
        %820 = vmatprep.subr.mxu0 0.0
        %821 = vmatpush1.msra.mxu0 0.0
        %822 = vmatprep.subr.mxu0 0.0
        %823 = vmatpush1.msra.mxu0 0.0
        %824 = vmatprep.subr.mxu0 0.0
        %825 = vmatpush1.msra.mxu0 0.0
        %826 = vmatprep.subr.mxu0 0.0
        %827 = vmatpush1.msra.mxu0 0.0
        %828 = vmatprep.subr.mxu0 0.0
        %829 = vmatpush1.msra.mxu0 0.0
        %830 = vmatprep.subr.mxu0 0.0
        %831 = vmatpush1.msra.mxu0 0.0
        %832 = vmatprep.subr.mxu0 0.0
        %833 = vmatpush1.msra.mxu0 0.0
        %834 = vmatprep.subr.mxu0 0.0
        %835 = vmatpush1.msra.mxu0 0.0
        %836 = vmatprep.subr.mxu0 0.0
        %837 = vmatpush1.msra.mxu0 0.0
        %838 = vmatprep.subr.mxu0 0.0
        %839 = vmatpush1.msra.mxu0 0.0
        %840 = vmatprep.subr.mxu0 0.0
        %841 = vmatpush1.msra.mxu0 0.0
        %842 = vmatprep.subr.mxu0 0.0
        %843 = vmatpush1.msra.mxu0 0.0
        %844 = vmatprep.subr.mxu0 0.0
        %845 = vmatpush1.msra.mxu0 0.0
        %846 = vmatprep.subr.mxu0 0.0
        %847 = vmatpush1.msra.mxu0 0.0
        %848 = vmatprep.subr.mxu0 0.0
        %849 = vmatpush1.msra.mxu0 0.0
        %850 = vmatprep.subr.mxu0 0.0
        %851 = vmatpush1.msra.mxu0 0.0
        %852 = vmatprep.mubr.f32.mxu0 0.0
        %853 = vmatmul.mubr.f32.gmra.mrb[0].mxu0 %v644
        %v854 = vpop.f32.mrb[0].mxu0
        %v855 = vadd.f32 0.0, %v854
        %v856 = vpop.f32.mrb[0].mxu0
        %857 = vdwg.mxu0
        %v858 = vld [vmem:[#allocation3] sm:$0x3]
        %v859 = vmul.f32 %v535, %v858
        %v860 = vsel %vm524, %v643, %v563
        %v862 = vsel %vm527, %v860, 0.0
        %863 = vadd.xlane.f32.xlu0 %v862
        %v864 = vpop.xlane.xlu0 %863
        %v865 = vadd.f32 %v859, %v864
        %vm866 = vcmask 1024
        %867 = vst.msk [vmem:[#allocation3] sm:$0x3] %vm866, %v865
        %v868 = vld [vmem:[#allocation4] sm:$0x3]
        %870 = vset.pattern.permute.xlu0 0
        %871 = vperm.xlu0 %870, %v535
        %v872 = vpop.permute.xlu0 %871
        %v874 = vmul.f32 %v872, %v868
        %v877 = vrot.slane %v713, 7
        %v878 = vsel %vm524, %v877, %v633
        %v880 = vadd.f32 %v874, %v878
        %vm881 = vcmask 254976
        %882 = vst.msk [vmem:[#allocation4] sm:$0x3] %vm881, %v880
        %v883 = vld [vmem:[#allocation5] sm:$0x3]
        %v884 = vmul.f32 %v872, %v883
        %v887 = vrot.slane %v855, 7
        %v888 = vsel %vm524, %v887, %v785
        %v890 = vadd.f32 %v884, %v888
        %891 = vst.msk [vmem:[#allocation5] sm:$0x3] %vm881, %v890
        %892 = vst.msk [vmem:[#allocation2] sm:$0x3] %vm866, %v532
        %p893 = scmp.eq.s32.totalorder %s25, 1
        // Predicated region
        $region125: #{tpu_custom_call.1} parent=111 // pred_check
          %p894 = pneg %p893
        $region126: #{tpu_custom_call.1} parent=111 // pred_check_branch
          %896 = sbr.rel (%p894) target = $region128
        $region127: #{tpu_custom_call.1} parent=111 // pred_region
          %v897 = vld [vmem:[#allocation3] sm:$0x3]
          %v898 = vrcp.pop %v897
          %v899 = vmul.f32 1.0, %v898
          %v900 = vld [vmem:[#allocation4] sm:$0x3]
          %902 = vset.pattern.permute.xlu0 0
          %903 = vperm.xlu0 %902, %v899
          %v904 = vpop.permute.xlu0 %903
          %v906 = vmul.f32 %v900, %v904
          %v907 = vld [vmem:[#allocation5] sm:$0x3]
          %v908 = vmul.f32 %v907, %v904
          %v909 = vmul.f32 %v906, %v906
          %v910 = vsub.f32 %v908, %v909
          %v911 = vmax.f32 %v910, 1e-09
          %v912 = vrsqrt.pop %v911
          %v913 = vmul.f32 %v911, %v912
          %vm914 = vcmp.eq.f32.partialorder %v911, inf
          %v915 = vsel %vm914, %v911, %v913
          %vm916 = vcmp.eq.f32.partialorder %v911, 0.0
          %v917 = vand.u32 %v911, 2147483648
          %v918 = vsel %vm916, %v917, %v915
          %919 = vst.msk [vmem:[#allocation9] sm:$0x3] %vm881, %v906
          %921 = vrot.lane.b32.xlu0 %v918, 32
          %v922 = vpop.permute.xlu0 %921
          %vm924 = vcmask 517376
          %925 = vst.msk [vmem:[#allocation9] sm:$0x3] %vm924, %v922
        $region128: #{tpu_custom_call.1} parent=111 // pred_fallthru
          _
        // Predicated region
        $region129: #{tpu_custom_call.1} parent=111 // pred_check
          %p926 = pneg %p190
        $region130: #{tpu_custom_call.1} parent=111 // pred_check_branch
          %928 = sbr.rel (%p926) target = $region132
        $region131: #{tpu_custom_call.1} parent=111 // pred_region
          %s930 = ssub.s32 32, 32
          %931 = vsyncadd [#allocation10], %s930
          %s932 = smul.addr %s24, 32
          %s933 = scalar_lea.hbm %s6, %s932
          %s935 = sshll.u32 [#allocation9], 4
          %s936 = int_to_ptr.vmem [resolvable:$true] %s935
          %938 = dma.vmem_to_hbm [thread:$0]  %s936, 32, %s933, [#allocation10]
        $region132: #{tpu_custom_call.1} parent=111 // pred_fallthru
          _
        // Predicated region
        $region133: #{tpu_custom_call.1} parent=111 // pred_check
          %p939 = pneg %p190
        $region134: #{tpu_custom_call.1} parent=111 // pred_check_branch
          %941 = sbr.rel (%p939) target = $region136
        $region135: #{tpu_custom_call.1} parent=111 // pred_region
          %942 = dma.done [#allocation10], 32
        $region136: #{tpu_custom_call.1} parent=111 // pred_fallthru
          _
      $region112: #{tpu_custom_call.1} parent=5 // pred_fallthru
        _
      %p943 = scmp.le.s32.totalorder 2, %s15
      // Predicated region
      $region137: #{tpu_custom_call.1} parent=5 // pred_check
        %p944 = pneg %p943
      $region138: #{tpu_custom_call.1} parent=5 // pred_check_branch
        %946 = sbr.rel (%p944) target = $region140
      $region139: #{tpu_custom_call.1} parent=5 // pred_region
        %s947 = ssub.s32 %s15, 2
      $region140: #{tpu_custom_call.1} parent=5 // pred_fallthru
        _
    $region6: #{tpu_custom_call.1} parent=1 // loop_footer
      %s19 = sadd.s32 1, %s15
    $region7: #{tpu_custom_call.1} parent=1 // loop_footer_branch
      %14 = sbr.rel target = $region3
    $region8: #{tpu_custom_call.1} parent=1 // loop_exit
      _
    %948 = vsyncpa [#allocation10], 1
    %s949 = scalar_lea.sflag [#allocation10], 1
    %950 = vsyncpa %s949, 1

</llo_original>
